<compile_context>
chip_gen: v5e
topology: v5e:2x2
jax: 0.10.0
libtpu: 0.0.40
codegen_flags: <defaults>
</compile_context>

<pallas_src>
import functools

import jax
import jax.numpy as jnp
from jax.experimental import pallas as pl
from jax.experimental.pallas import tpu as pltpu

LANE = 128          # vreg lane width  -> hidden/output cols padded to this
SUBLANE = 8         # vreg sublane height -> batch tile rounded to this
LARGE_TILE_N = 1024 # batch tile for large N (double-buffered out tile ~1 MiB:
                    # safe for v7x 64 MiB VMEM and v5e's 16 MiB scoped default)


def mlp_kernel(x_ref, w1_ref, b1_ref, w2_ref, b2_ref, o_ref):
    """One (tile_n, ...) batch tile of relu(x@W1+b1) @ W2 + b2, all on the MXU."""
    # ---- layer 1 on the MXU: (tile_n, F) x (F, H_pad), K=F=2 ------------
    # Mosaic pads the tiny contraction internally; this replaces the old
    # broadcast-FMA loop that burned VALU/XLU slots.
    h = jnp.dot(x_ref[...], w1_ref[...], preferred_element_type=jnp.float32)
    h = jnp.maximum(h + b1_ref[...], 0.0)                 # bias + ReLU (VPU)
    # ---- layer 2 on the MXU: lane-dense (tile_n, H_pad) x (H_pad, O_pad) -
    y = jnp.dot(h, w2_ref[...], preferred_element_type=jnp.float32)
    o_ref[...] = (y + b2_ref[...]).astype(o_ref.dtype)    # lane-dense store


def _round_up(n, m):
    return ((n + m - 1) // m) * m


def _pad2d(a, rows, cols):
    return jnp.pad(a, ((0, rows - a.shape[0]), (0, cols - a.shape[1])))


@functools.partial(jax.jit, static_argnames=("tile_n",))
def net_forward(x, w1, b1, w2, b2, *, tile_n=None):
    """Pallas equivalent of Net.forward.

    x  : (N, n_feature)          float32
    w1 : (n_feature, n_hidden)   transposed PyTorch Linear weight
    b1 : (1, n_hidden)
    w2 : (n_hidden, n_output)
    b2 : (1, n_output)
    """
    n, f = x.shape
    h = w1.shape[1]
    o = w2.shape[1]

    h_pad = _round_up(max(h, LANE), LANE)
    o_pad = _round_up(max(o, LANE), LANE)

    if tile_n is None:
        # Small N: a single tile covering the whole batch -> grid=(1,), no
        # pipeline prologue/epilogue or per-step fixed cost (the kernel is
        # entirely launch/DMA-latency bound at this size).  Large N: 1024-row
        # tiles, multiple "parallel" steps so v7x's second TensorCore is used.
        tile_n = _round_up(n, SUBLANE) if n <= LARGE_TILE_N else LARGE_TILE_N
    tile_n = _round_up(tile_n, SUBLANE)
    n_pad = _round_up(n, tile_n)

    # Zero-pad to lane/sublane-friendly shapes.  Padding is inert: padded
    # hidden units ReLU to 0 and contribute nothing; padded w2/b2 columns only
    # feed padded output columns which are sliced off below.  The feature dim
    # (K=2) is deliberately NOT padded — Mosaic handles the small contraction.
    x_p = jnp.pad(x, ((0, n_pad - n), (0, 0)))
    w1_p = _pad2d(w1, f, h_pad)
    b1_p = _pad2d(b1, 1, h_pad)
    w2_p = _pad2d(w2, h_pad, o_pad)
    b2_p = _pad2d(b2, 1, o_pad)

    # Advisory cost: tiny FLOP/byte counts so XLA schedules the surrounding
    # pad/slice around a latency-dominated kernel correctly.
    bytes_accessed = 4 * (x_p.size + w1_p.size + b1_p.size + w2_p.size
                          + b2_p.size + n_pad * o_pad)
    cost = pl.CostEstimate(flops=2 * n * (f * h + h * o),
                           transcendentals=0,
                           bytes_accessed=bytes_accessed)

    out_pad = pl.pallas_call(
        mlp_kernel,
        out_shape=jax.ShapeDtypeStruct((n_pad, o_pad), x.dtype),
        grid=(n_pad // tile_n,),
        in_specs=[
            pl.BlockSpec((tile_n, f), lambda i: (i, 0)),   # x: batch-tiled
            # Weights/biases: constant index_map -> DMA'd once, VMEM-resident.
            pl.BlockSpec(w1_p.shape, lambda i: (0, 0)),
            pl.BlockSpec(b1_p.shape, lambda i: (0, 0)),
            pl.BlockSpec(w2_p.shape, lambda i: (0, 0)),
            pl.BlockSpec(b2_p.shape, lambda i: (0, 0)),
        ],
        # Lane-dense (128-wide) output store -> unmasked vst.  If N ever scales
        # into the writeback-bound regime, pack 64 batch rows x 2 real outputs
        # per 128-lane row instead of padding (64x HBM writeback saving).
        out_specs=pl.BlockSpec((tile_n, o_pad), lambda i: (i, 0)),
        compiler_params=pltpu.CompilerParams(
            dimension_semantics=("parallel",),
            vmem_limit_bytes=32 * 1024 * 1024),  # explicit headroom vs v5e's
                                                 # 16 MiB default scoped limit
        cost_estimate=cost,
    )(x_p, w1_p, b1_p, w2_p, b2_p)

    return out_pad[:n, :o]


def init_linear_params(key, in_features, out_features):
    """Deterministic init mimicking torch.nn.Linear (uniform +-1/sqrt(in))."""
    k_w, k_b = jax.random.split(key)
    bound = 1.0 / jnp.sqrt(jnp.float32(in_features))
    # PyTorch stores weight as (out, in); we keep the transposed (in, out) layout.
    w = jax.random.uniform(k_w, (in_features, out_features),
                           minval=-bound, maxval=bound, dtype=jnp.float32)
    b = jax.random.uniform(k_b, (1, out_features),
                           minval=-bound, maxval=bound, dtype=jnp.float32)
    return w, b


if __name__ == "__main__":
    # Shapes implied by the torch script: 2 features -> 32 hidden -> 2 outputs,
    # 100 + 100 rows of data.
    n_feature, n_hidden, n_output = 2, 32, 2
    n_per_class = 100

    key = jax.random.PRNGKey(0)
    k_x0, k_x1, k_h, k_o = jax.random.split(key, 4)

    # Two Gaussian blobs at +2 / -2, analogous to torch.normal(+-2*ones, 1).
    x0 = 2.0 + jax.random.normal(k_x0, (n_per_class, n_feature), dtype=jnp.float32)
    x1 = -2.0 + jax.random.normal(k_x1, (n_per_class, n_feature), dtype=jnp.float32)
    x = jnp.concatenate([x0, x1], axis=0)

    w1, b1 = init_linear_params(k_h, n_feature, n_hidden)
    w2, b2 = init_linear_params(k_o, n_hidden, n_output)

    out = net_forward(x, w1, b1, w2, b2)
    jax.block_until_ready(out)

    # Reference check in plain JAX (kernel stays f32 end-to-end, tight tol).
    ref = jnp.maximum(x @ w1 + b1, 0.0) @ w2 + b2
    assert out.shape == (2 * n_per_class, n_output)
    assert jnp.allclose(out, ref, atol=1e-5, rtol=1e-5)

    print("KERNEL_OK")
</pallas_src>

<mosaic_0001>
module attributes {stable_mosaic.version = 11 : i64} {
  func.func @mlp_kernel(%arg0: i32, %arg1: memref<200x2xf32, #tpu.memory_space<vmem>>, %arg2: memref<2x128xf32, #tpu.memory_space<vmem>>, %arg3: memref<1x128xf32, #tpu.memory_space<vmem>>, %arg4: memref<128x128xf32, #tpu.memory_space<vmem>>, %arg5: memref<1x128xf32, #tpu.memory_space<vmem>>, %arg6: memref<200x128xf32, #tpu.memory_space<vmem>>) attributes {dimension_semantics = [#tpu.dimension_semantics<parallel>], iteration_bounds = array<i64: 1>, scalar_prefetch = 0 : i64, scratch_operands = 0 : i64, tpu.core_type = #tpu.core_type<tc>, window_params = [{transform_indices = @transform_0, window_bounds = array<i64: 200, 2>}, {pipeline_mode = #tpu.pipeline_mode<synchronous>, transform_indices = @transform_1, window_bounds = array<i64: 2, 128>}, {pipeline_mode = #tpu.pipeline_mode<synchronous>, transform_indices = @transform_2, window_bounds = array<i64: 1, 128>}, {pipeline_mode = #tpu.pipeline_mode<synchronous>, transform_indices = @transform_3, window_bounds = array<i64: 128, 128>}, {pipeline_mode = #tpu.pipeline_mode<synchronous>, transform_indices = @transform_4, window_bounds = array<i64: 1, 128>}, {transform_indices = @transform_5, window_bounds = array<i64: 200, 128>}]} {
    %c0 = arith.constant 0 : index
    %c0_0 = arith.constant 0 : index
    %0 = vector.load %arg1[%c0, %c0_0] : memref<200x2xf32, #tpu.memory_space<vmem>>, vector<200x2xf32>
    %c0_1 = arith.constant 0 : index
    %c0_2 = arith.constant 0 : index
    %1 = vector.load %arg2[%c0_1, %c0_2] : memref<2x128xf32, #tpu.memory_space<vmem>>, vector<2x128xf32>
    %cst = arith.constant dense<0.000000e+00> : vector<200x128xf32>
    %2 = tpu.matmul %0, %1, %cst {dimension_numbers = #tpu.dot_dimension_numbers<[1], [0], [0], [1], [0, 0, 1, 1], [], []>} : vector<200x2xf32>, vector<2x128xf32>, vector<200x128xf32> -> vector<200x128xf32>
    %c0_3 = arith.constant 0 : index
    %c0_4 = arith.constant 0 : index
    %3 = vector.load %arg3[%c0_3, %c0_4] : memref<1x128xf32, #tpu.memory_space<vmem>>, vector<1x128xf32>
    %4 = vector.broadcast %3 : vector<1x128xf32> to vector<200x128xf32>
    %5 = arith.addf %2, %4 : vector<200x128xf32>
    %cst_5 = arith.constant 0.000000e+00 : f32
    %6 = vector.broadcast %cst_5 : f32 to vector<200x128xf32>
    %7 = arith.maximumf %5, %6 : vector<200x128xf32>
    %c0_6 = arith.constant 0 : index
    %c0_7 = arith.constant 0 : index
    %8 = vector.load %arg4[%c0_6, %c0_7] : memref<128x128xf32, #tpu.memory_space<vmem>>, vector<128x128xf32>
    %cst_8 = arith.constant dense<0.000000e+00> : vector<200x128xf32>
    %9 = tpu.matmul %7, %8, %cst_8 {dimension_numbers = #tpu.dot_dimension_numbers<[1], [0], [0], [1], [0, 0, 1, 1], [], []>} : vector<200x128xf32>, vector<128x128xf32>, vector<200x128xf32> -> vector<200x128xf32>
    %c0_9 = arith.constant 0 : index
    %c0_10 = arith.constant 0 : index
    %10 = vector.load %arg5[%c0_9, %c0_10] : memref<1x128xf32, #tpu.memory_space<vmem>>, vector<1x128xf32>
    %11 = vector.broadcast %10 : vector<1x128xf32> to vector<200x128xf32>
    %12 = arith.addf %9, %11 : vector<200x128xf32>
    %c0_11 = arith.constant 0 : index
    %c0_12 = arith.constant 0 : index
    %13 = vector.load %arg6[%c0_11, %c0_12] : memref<200x128xf32, #tpu.memory_space<vmem>>, vector<200x128xf32>
    tpu.vector_store %arg6[%c0_11, %c0_12], %12 {strides = array<i32>} : memref<200x128xf32, #tpu.memory_space<vmem>>, vector<200x128xf32>,
    return
  }
  func.func @transform_0(%arg0: i32) -> (i32, i32) {
    %c0_i32 = arith.constant 0 : i32
    %c0_i32_0 = arith.constant 0 : i32
    return %arg0, %c0_i32 : i32, i32
  }
  func.func @transform_1(%arg0: i32) -> (i32, i32) {
    %c0_i32 = arith.constant 0 : i32
    %c0_i32_0 = arith.constant 0 : i32
    %c0_i32_1 = arith.constant 0 : i32
    return %c0_i32, %c0_i32_0 : i32, i32
  }
  func.func @transform_2(%arg0: i32) -> (i32, i32) {
    %c0_i32 = arith.constant 0 : i32
    %c0_i32_0 = arith.constant 0 : i32
    %c0_i32_1 = arith.constant 0 : i32
    return %c0_i32, %c0_i32_0 : i32, i32
  }
  func.func @transform_3(%arg0: i32) -> (i32, i32) {
    %c0_i32 = arith.constant 0 : i32
    %c0_i32_0 = arith.constant 0 : i32
    %c0_i32_1 = arith.constant 0 : i32
    return %c0_i32, %c0_i32_0 : i32, i32
  }
  func.func @transform_4(%arg0: i32) -> (i32, i32) {
    %c0_i32 = arith.constant 0 : i32
    %c0_i32_0 = arith.constant 0 : i32
    %c0_i32_1 = arith.constant 0 : i32
    return %c0_i32, %c0_i32_0 : i32, i32
  }
  func.func @transform_5(%arg0: i32) -> (i32, i32) {
    %c0_i32 = arith.constant 0 : i32
    %c0_i32_0 = arith.constant 0 : i32
    return %arg0, %c0_i32 : i32, i32
  }
}

</mosaic_0001>

<llo_original>
// kernel: net_forward.1
$region0: #{net_forward.1}
  #allocation0 [shape = 'u32[]', space=smem, size = 0x4, offset = 0x4, fixed_abs, tag = 'smem constant byte address 0x4 - core index']
  #allocation1 [shape = 'u32[72,128]{1,0:T(1,128)}', space=vmem, size = 0x9000, scoped, tag = 'internal scratch']
  %s0 = inlined_call_operand.vmem [shape: f32[200,2], index: 0, kind: input, shape index: {}]
  %s1 = inlined_call_operand.vmem [shape: f32[2,128], index: 1, kind: input, shape index: {}]
  %s2 = inlined_call_operand.vmem [shape: f32[1,128], index: 2, kind: input, shape index: {}]
  %s3 = inlined_call_operand.vmem [shape: f32[128,128], index: 3, kind: input, shape index: {}]
  %s4 = inlined_call_operand.vmem [shape: f32[1,128], index: 4, kind: input, shape index: {}]
  %s5 = inlined_call_operand.vmem [shape: f32[200,128], index: 5, kind: output, shape index: {}]
  %s6 = sld [smem:[#allocation0]]
  $region30: #{net_forward.1} parent=0
    _
  %s8 = ssub.s32 1, %s6
  %s9 = scalar_select 0, %s8, %s6
  // Predicated region
  $region2: #{net_forward.1} parent=0 // pred_check
    _
  $region3: #{net_forward.1} parent=0 // pred_check_branch
    %11 = sbr.rel (0) target = $region5
  $region4: #{net_forward.1} parent=0 // pred_region
    _
  $region5: #{net_forward.1} parent=0 // pred_fallthru
    _
  // Predicated region
  $region6: #{net_forward.1} parent=0 // pred_check
    _
  $region7: #{net_forward.1} parent=0 // pred_check_branch
    %13 = sbr.rel (0) target = $region9
  $region8: #{net_forward.1} parent=0 // pred_region
    _
  $region9: #{net_forward.1} parent=0 // pred_fallthru
    _
  // Predicated region
  $region10: #{net_forward.1} parent=0 // pred_check
    _
  $region11: #{net_forward.1} parent=0 // pred_check_branch
    %15 = sbr.rel (0) target = $region13
  $region12: #{net_forward.1} parent=0 // pred_region
    _
  $region13: #{net_forward.1} parent=0 // pred_fallthru
    _
  // Predicated region
  $region14: #{net_forward.1} parent=0 // pred_check
    _
  $region15: #{net_forward.1} parent=0 // pred_check_branch
    %17 = sbr.rel (0) target = $region17
  $region16: #{net_forward.1} parent=0 // pred_region
    _
  $region17: #{net_forward.1} parent=0 // pred_fallthru
    _
  // Predicated region
  $region18: #{net_forward.1} parent=0 // pred_check
    _
  $region19: #{net_forward.1} parent=0 // pred_check_branch
    %19 = sbr.rel (0) target = $region21
  $region20: #{net_forward.1} parent=0 // pred_region
    _
  $region21: #{net_forward.1} parent=0 // pred_fallthru
    _
  %v20 = vld [vmem:[%s0] sm:$0xff]
  %v21 = vld [vmem:[%s0 + $0x8] sm:$0xff]
  %v22 = vld [vmem:[%s0 + $0x10] sm:$0xff]
  %v23 = vld [vmem:[%s0 + $0x18] sm:$0xff]
  %v24 = vld [vmem:[%s0 + $0x20] sm:$0xff]
  %v25 = vld [vmem:[%s0 + $0x28] sm:$0xff]
  %v26 = vld [vmem:[%s0 + $0x30] sm:$0xff]
  %v27 = vld [vmem:[%s0 + $0x38] sm:$0xff]
  %v28 = vld [vmem:[%s0 + $0x40] sm:$0xff]
  %v29 = vld [vmem:[%s0 + $0x48] sm:$0xff]
  %v30 = vld [vmem:[%s0 + $0x50] sm:$0xff]
  %v31 = vld [vmem:[%s0 + $0x58] sm:$0xff]
  %v32 = vld [vmem:[%s0 + $0x60] sm:$0xff]
  %v33 = vld [vmem:[%s0 + $0x68] sm:$0xff]
  %v34 = vld [vmem:[%s0 + $0x70] sm:$0xff]
  %v35 = vld [vmem:[%s0 + $0x78] sm:$0xff]
  %v36 = vld [vmem:[%s0 + $0x80] sm:$0xff]
  %v37 = vld [vmem:[%s0 + $0x88] sm:$0xff]
  %v38 = vld [vmem:[%s0 + $0x90] sm:$0xff]
  %v39 = vld [vmem:[%s0 + $0x98] sm:$0xff]
  %v40 = vld [vmem:[%s0 + $0xa0] sm:$0xff]
  %v41 = vld [vmem:[%s0 + $0xa8] sm:$0xff]
  %v42 = vld [vmem:[%s0 + $0xb0] sm:$0xff]
  %v43 = vld [vmem:[%s0 + $0xb8] sm:$0xff]
  %v44 = vld [vmem:[%s0 + $0xc0] sm:$0xff]
  %v45 = vld [vmem:[%s1] sm:$0x3]
  %v46 = vld [vmem:[%s2] sm:$0x1]
  %v48 = vperm.slane %v46, 0
  %vm50 = vcmask 15360
  %v52 = vsel %vm50, %v20, 0
  %v55 = vsel %vm50, %v21, 0
  %v58 = vsel %vm50, %v22, 0
  %v61 = vsel %vm50, %v23, 0
  %v64 = vsel %vm50, %v24, 0
  %v67 = vsel %vm50, %v25, 0
  %v70 = vsel %vm50, %v26, 0
  %v73 = vsel %vm50, %v27, 0
  %v76 = vsel %vm50, %v28, 0
  %v79 = vsel %vm50, %v29, 0
  %v82 = vsel %vm50, %v30, 0
  %v85 = vsel %vm50, %v31, 0
  %v88 = vsel %vm50, %v32, 0
  %v91 = vsel %vm50, %v33, 0
  %v94 = vsel %vm50, %v34, 0
  %v97 = vsel %vm50, %v35, 0
  %v100 = vsel %vm50, %v36, 0
  %v103 = vsel %vm50, %v37, 0
  %v106 = vsel %vm50, %v38, 0
  %v109 = vsel %vm50, %v39, 0
  %v112 = vsel %vm50, %v40, 0
  %v115 = vsel %vm50, %v41, 0
  %v118 = vsel %vm50, %v42, 0
  %v121 = vsel %vm50, %v43, 0
  %v124 = vsel %vm50, %v44, 0
  %vm126 = vcmask 1041408
  %v128 = vsel %vm126, %v45, 0
  %130 = vmatpush.msra.mxu0 0.0
  %131 = vmatpush.msra.mxu0 0.0
  %132 = vmatpush.msra.mxu0 0.0
  %133 = vmatpush.msra.mxu0 0.0
  %134 = vmatpush.msra.mxu0 0.0
  %135 = vmatpush.msra.mxu0 0.0
  %136 = vmatpush.msra.mxu0 0.0
  %137 = vmatpush.msra.mxu0 0.0
  %138 = vmatpush.msra.mxu0 0.0
  %139 = vmatpush.msra.mxu0 0.0
  %140 = vmatpush.msra.mxu0 0.0
  %141 = vmatpush.msra.mxu0 0.0
  %142 = vmatpush.msra.mxu0 0.0
  %143 = vmatpush.msra.mxu0 0.0
  %144 = vmatpush.msra.mxu0 0.0
  %145 = vmatpush.msra.mxu0 %v128
  %146 = vmatmul.f32.gmra.mxu0 %v52
  %v147 = vpop.f32.mrf.mxu0
  %v148 = vadd.f32 %v48, %v147
  %149 = vmatmul.f32.gmra.mxu0 %v55
  %v150 = vpop.f32.mrf.mxu0
  %v151 = vadd.f32 %v48, %v150
  %152 = vmatmul.f32.gmra.mxu0 %v58
  %v153 = vpop.f32.mrf.mxu0
  %v154 = vadd.f32 %v48, %v153
  %155 = vmatmul.f32.gmra.mxu0 %v61
  %v156 = vpop.f32.mrf.mxu0
  %v157 = vadd.f32 %v48, %v156
  %158 = vmatmul.f32.gmra.mxu0 %v64
  %v159 = vpop.f32.mrf.mxu0
  %v160 = vadd.f32 %v48, %v159
  %161 = vmatmul.f32.gmra.mxu0 %v67
  %v162 = vpop.f32.mrf.mxu0
  %v163 = vadd.f32 %v48, %v162
  %164 = vmatmul.f32.gmra.mxu0 %v70
  %v165 = vpop.f32.mrf.mxu0
  %v166 = vadd.f32 %v48, %v165
  %167 = vmatmul.f32.gmra.mxu0 %v73
  %v168 = vpop.f32.mrf.mxu0
  %v169 = vadd.f32 %v48, %v168
  %170 = vmatmul.f32.gmra.mxu0 %v76
  %v171 = vpop.f32.mrf.mxu0
  %v172 = vadd.f32 %v48, %v171
  %173 = vmatmul.f32.gmra.mxu0 %v79
  %v174 = vpop.f32.mrf.mxu0
  %v175 = vadd.f32 %v48, %v174
  %176 = vmatmul.f32.gmra.mxu0 %v82
  %v177 = vpop.f32.mrf.mxu0
  %v178 = vadd.f32 %v48, %v177
  %179 = vmatmul.f32.gmra.mxu0 %v85
  %v180 = vpop.f32.mrf.mxu0
  %v181 = vadd.f32 %v48, %v180
  %182 = vmatmul.f32.gmra.mxu0 %v88
  %v183 = vpop.f32.mrf.mxu0
  %v184 = vadd.f32 %v48, %v183
  %185 = vmatmul.f32.gmra.mxu0 %v91
  %v186 = vpop.f32.mrf.mxu0
  %v187 = vadd.f32 %v48, %v186
  %188 = vmatmul.f32.gmra.mxu0 %v94
  %v189 = vpop.f32.mrf.mxu0
  %v190 = vadd.f32 %v48, %v189
  %191 = vmatmul.f32.gmra.mxu0 %v97
  %v192 = vpop.f32.mrf.mxu0
  %v193 = vadd.f32 %v48, %v192
  %194 = vmatmul.f32.gmra.mxu0 %v100
  %v195 = vpop.f32.mrf.mxu0
  %v196 = vadd.f32 %v48, %v195
  %197 = vmatmul.f32.gmra.mxu0 %v103
  %v198 = vpop.f32.mrf.mxu0
  %v199 = vadd.f32 %v48, %v198
  %200 = vmatmul.f32.gmra.mxu0 %v106
  %v201 = vpop.f32.mrf.mxu0
  %v202 = vadd.f32 %v48, %v201
  %203 = vmatmul.f32.gmra.mxu0 %v109
  %v204 = vpop.f32.mrf.mxu0
  %v205 = vadd.f32 %v48, %v204
  %206 = vmatmul.f32.gmra.mxu0 %v112
  %v207 = vpop.f32.mrf.mxu0
  %v208 = vadd.f32 %v48, %v207
  %209 = vmatmul.f32.gmra.mxu0 %v115
  %v210 = vpop.f32.mrf.mxu0
  %v211 = vadd.f32 %v48, %v210
  %212 = vmatmul.f32.gmra.mxu0 %v118
  %v213 = vpop.f32.mrf.mxu0
  %v214 = vadd.f32 %v48, %v213
  %215 = vmatmul.f32.gmra.mxu0 %v121
  %v216 = vpop.f32.mrf.mxu0
  %v217 = vadd.f32 %v48, %v216
  %218 = vmatmul.f32.gmra.mxu0 %v124
  %v219 = vpop.f32.mrf.mxu0
  %v220 = vadd.f32 %v48, %v219
  %221 = vdwg.mxu0
  %v222 = vmax.f32 %v148, 0.0
  %v223 = vmax.f32 %v151, 0.0
  %v224 = vmax.f32 %v154, 0.0
  %v225 = vmax.f32 %v157, 0.0
  %v226 = vmax.f32 %v160, 0.0
  %v227 = vmax.f32 %v163, 0.0
  %v228 = vmax.f32 %v166, 0.0
  %v229 = vmax.f32 %v169, 0.0
  %v230 = vmax.f32 %v172, 0.0
  %v231 = vmax.f32 %v175, 0.0
  %v232 = vmax.f32 %v178, 0.0
  %v233 = vmax.f32 %v181, 0.0
  %v234 = vmax.f32 %v184, 0.0
  %v235 = vmax.f32 %v187, 0.0
  %v236 = vmax.f32 %v190, 0.0
  %v237 = vmax.f32 %v193, 0.0
  %v238 = vmax.f32 %v196, 0.0
  %v239 = vmax.f32 %v199, 0.0
  %v240 = vmax.f32 %v202, 0.0
  %v241 = vmax.f32 %v205, 0.0
  %v242 = vmax.f32 %v208, 0.0
  %v243 = vmax.f32 %v211, 0.0
  %v244 = vmax.f32 %v214, 0.0
  %v245 = vmax.f32 %v217, 0.0
  %v246 = vmax.f32 %v220, 0.0
  %v247 = vld [vmem:[%s3] sm:$0xff]
  %v248 = vld [vmem:[%s3 + $0x8] sm:$0xff]
  %v249 = vld [vmem:[%s3 + $0x10] sm:$0xff]
  %v250 = vld [vmem:[%s3 + $0x18] sm:$0xff]
  %v251 = vld [vmem:[%s3 + $0x20] sm:$0xff]
  %v252 = vld [vmem:[%s3 + $0x28] sm:$0xff]
  %v253 = vld [vmem:[%s3 + $0x30] sm:$0xff]
  %v254 = vld [vmem:[%s3 + $0x38] sm:$0xff]
  %v255 = vld [vmem:[%s3 + $0x40] sm:$0xff]
  %v256 = vld [vmem:[%s3 + $0x48] sm:$0xff]
  %v257 = vld [vmem:[%s3 + $0x50] sm:$0xff]
  %v258 = vld [vmem:[%s3 + $0x58] sm:$0xff]
  %v259 = vld [vmem:[%s3 + $0x60] sm:$0xff]
  %v260 = vld [vmem:[%s3 + $0x68] sm:$0xff]
  %v261 = vld [vmem:[%s3 + $0x70] sm:$0xff]
  %v262 = vld [vmem:[%s3 + $0x78] sm:$0xff]
  %v263 = vld [vmem:[%s4] sm:$0x1]
  %v265 = vperm.slane %v263, 0
  %267 = vmatpush.msra.mxu0 %v262
  %268 = vmatpush.msra.mxu0 %v261
  %269 = vmatpush.msra.mxu0 %v260
  %270 = vmatpush.msra.mxu0 %v259
  %271 = vmatpush.msra.mxu0 %v258
  %272 = vmatpush.msra.mxu0 %v257
  %273 = vmatpush.msra.mxu0 %v256
  %274 = vmatpush.msra.mxu0 %v255
  %275 = vmatpush.msra.mxu0 %v254
  %276 = vmatpush.msra.mxu0 %v253
  %277 = vmatpush.msra.mxu0 %v252
  %278 = vmatpush.msra.mxu0 %v251
  %279 = vmatpush.msra.mxu0 %v250
  %280 = vmatpush.msra.mxu0 %v249
  %281 = vmatpush.msra.mxu0 %v248
  %282 = vmatpush.msra.mxu0 %v247
  %283 = vmatmul.f32.gmra.mxu0 %v222
  %v284 = vpop.f32.mrf.mxu0
  %v285 = vadd.f32 %v265, %v284
  %286 = vmatmul.f32.gmra.mxu0 %v223
  %v287 = vpop.f32.mrf.mxu0
  %v288 = vadd.f32 %v265, %v287
  %289 = vmatmul.f32.gmra.mxu0 %v224
  %v290 = vpop.f32.mrf.mxu0
  %v291 = vadd.f32 %v265, %v290
  %292 = vmatmul.f32.gmra.mxu0 %v225
  %v293 = vpop.f32.mrf.mxu0
  %v294 = vadd.f32 %v265, %v293
  %295 = vmatmul.f32.gmra.mxu0 %v226
  %v296 = vpop.f32.mrf.mxu0
  %v297 = vadd.f32 %v265, %v296
  %298 = vmatmul.f32.gmra.mxu0 %v227
  %v299 = vpop.f32.mrf.mxu0
  %v300 = vadd.f32 %v265, %v299
  %301 = vmatmul.f32.gmra.mxu0 %v228
  %v302 = vpop.f32.mrf.mxu0
  %v303 = vadd.f32 %v265, %v302
  %304 = vmatmul.f32.gmra.mxu0 %v229
  %v305 = vpop.f32.mrf.mxu0
  %v306 = vadd.f32 %v265, %v305
  %307 = vmatmul.f32.gmra.mxu0 %v230
  %v308 = vpop.f32.mrf.mxu0
  %v309 = vadd.f32 %v265, %v308
  %310 = vmatmul.f32.gmra.mxu0 %v231
  %v311 = vpop.f32.mrf.mxu0
  %v312 = vadd.f32 %v265, %v311
  %313 = vmatmul.f32.gmra.mxu0 %v232
  %v314 = vpop.f32.mrf.mxu0
  %v315 = vadd.f32 %v265, %v314
  %316 = vmatmul.f32.gmra.mxu0 %v233
  %v317 = vpop.f32.mrf.mxu0
  %v318 = vadd.f32 %v265, %v317
  %319 = vmatmul.f32.gmra.mxu0 %v234
  %v320 = vpop.f32.mrf.mxu0
  %v321 = vadd.f32 %v265, %v320
  %322 = vmatmul.f32.gmra.mxu0 %v235
  %v323 = vpop.f32.mrf.mxu0
  %v324 = vadd.f32 %v265, %v323
  %325 = vmatmul.f32.gmra.mxu0 %v236
  %v326 = vpop.f32.mrf.mxu0
  %v327 = vadd.f32 %v265, %v326
  %328 = vmatmul.f32.gmra.mxu0 %v237
  %v329 = vpop.f32.mrf.mxu0
  %v330 = vadd.f32 %v265, %v329
  %331 = vmatmul.f32.gmra.mxu0 %v238
  %v332 = vpop.f32.mrf.mxu0
  %v333 = vadd.f32 %v265, %v332
  %334 = vmatmul.f32.gmra.mxu0 %v239
  %v335 = vpop.f32.mrf.mxu0
  %v336 = vadd.f32 %v265, %v335
  %337 = vmatmul.f32.gmra.mxu0 %v240
  %v338 = vpop.f32.mrf.mxu0
  %v339 = vadd.f32 %v265, %v338
  %340 = vmatmul.f32.gmra.mxu0 %v241
  %v341 = vpop.f32.mrf.mxu0
  %v342 = vadd.f32 %v265, %v341
  %343 = vmatmul.f32.gmra.mxu0 %v242
  %v344 = vpop.f32.mrf.mxu0
  %v345 = vadd.f32 %v265, %v344
  %346 = vmatmul.f32.gmra.mxu0 %v243
  %v347 = vpop.f32.mrf.mxu0
  %v348 = vadd.f32 %v265, %v347
  %349 = vmatmul.f32.gmra.mxu0 %v244
  %v350 = vpop.f32.mrf.mxu0
  %v351 = vadd.f32 %v265, %v350
  %352 = vmatmul.f32.gmra.mxu0 %v245
  %v353 = vpop.f32.mrf.mxu0
  %v354 = vadd.f32 %v265, %v353
  %355 = vmatmul.f32.gmra.mxu0 %v246
  %v356 = vpop.f32.mrf.mxu0
  %v357 = vadd.f32 %v265, %v356
  %358 = vdwg.mxu0
  %359 = vst [vmem:[%s5] sm:$0xff] %v285
  %360 = vst [vmem:[%s5 + $0x8] sm:$0xff] %v288
  %361 = vst [vmem:[%s5 + $0x10] sm:$0xff] %v291
  %362 = vst [vmem:[%s5 + $0x18] sm:$0xff] %v294
  %363 = vst [vmem:[%s5 + $0x20] sm:$0xff] %v297
  %364 = vst [vmem:[%s5 + $0x28] sm:$0xff] %v300
  %365 = vst [vmem:[%s5 + $0x30] sm:$0xff] %v303
  %366 = vst [vmem:[%s5 + $0x38] sm:$0xff] %v306
  %367 = vst [vmem:[%s5 + $0x40] sm:$0xff] %v309
  %368 = vst [vmem:[%s5 + $0x48] sm:$0xff] %v312
  %369 = vst [vmem:[%s5 + $0x50] sm:$0xff] %v315
  %370 = vst [vmem:[%s5 + $0x58] sm:$0xff] %v318
  %371 = vst [vmem:[%s5 + $0x60] sm:$0xff] %v321
  %372 = vst [vmem:[%s5 + $0x68] sm:$0xff] %v324
  %373 = vst [vmem:[%s5 + $0x70] sm:$0xff] %v327
  %374 = vst [vmem:[%s5 + $0x78] sm:$0xff] %v330
  %375 = vst [vmem:[%s5 + $0x80] sm:$0xff] %v333
  %376 = vst [vmem:[%s5 + $0x88] sm:$0xff] %v336
  %377 = vst [vmem:[%s5 + $0x90] sm:$0xff] %v339
  %378 = vst [vmem:[%s5 + $0x98] sm:$0xff] %v342
  %379 = vst [vmem:[%s5 + $0xa0] sm:$0xff] %v345
  %380 = vst [vmem:[%s5 + $0xa8] sm:$0xff] %v348
  %381 = vst [vmem:[%s5 + $0xb0] sm:$0xff] %v351
  %382 = vst [vmem:[%s5 + $0xb8] sm:$0xff] %v354
  %383 = vst [vmem:[%s5 + $0xc0] sm:$0xff] %v357
  // Predicated region
  $region22: #{net_forward.1} parent=0 // pred_check
    _
  $region23: #{net_forward.1} parent=0 // pred_check_branch
    %385 = sbr.rel (0) target = $region25
  $region24: #{net_forward.1} parent=0 // pred_region
    _
  $region25: #{net_forward.1} parent=0 // pred_fallthru
    _
  // Predicated region
  $region26: #{net_forward.1} parent=0 // pred_check
    _
  $region27: #{net_forward.1} parent=0 // pred_check_branch
    %387 = sbr.rel (0) target = $region29
  $region28: #{net_forward.1} parent=0 // pred_region
    _
  $region29: #{net_forward.1} parent=0 // pred_fallthru
    _

</llo_original>
